<compile_context>
chip_gen: v5e
topology: v5e:2x2
jax: 0.10.0
libtpu: 0.0.40
codegen_flags: <defaults>
</compile_context>

<pallas_src>
import jax
import jax.numpy as jnp
import numpy as np
from jax.experimental import pallas as pl
from jax.experimental.pallas import tpu as pltpu


def _round_up(x, m):
    return ((x + m - 1) // m) * m


def _pick_tile(n, target, align, *, vmem_row_bytes=None, vmem_budget=None,
               min_blocks=2):
    """Row/lane tile size: <= target, multiple of `align`, fits a VMEM budget
    of double-buffered bytes, and leaves >= min_blocks grid blocks when the
    (padded) extent allows it (so both v7x TensorCores are fed)."""
    n_pad = _round_up(n, align)
    tile = min(target, n_pad)
    if vmem_row_bytes is not None and vmem_budget is not None:
        max_rows = max(align, (vmem_budget // vmem_row_bytes) // align * align)
        tile = min(tile, max_rows)
    if n_pad > align and _round_up(n_pad, tile) // tile < min_blocks:
        half = _round_up((n_pad + 1) // 2, align)
        tile = min(tile, half)
    return max(align, min(tile, n_pad))


# ---------------------------------------------------------------------------
# Kernel 1: neighbor smoothing.  Pure (k+1)-term FMA chain per row tile:
#   out[i, :] = sum_j w[i, j] * gathered[j, i, :]
# where gathered slice 0 is the row's own feature with weight = mask, and
# slices 1..k are the top-k neighbors with weights (1-mask) * normalized sim.
# ---------------------------------------------------------------------------
def _smooth_kernel(gath_ref, w_ref, out_ref):
    # gath_ref: (k+1, tm, D) bf16   w_ref: (tm, k+1) f32   out_ref: (tm, D) bf16
    k1 = gath_ref.shape[0]
    # bf16 -> f32 upcast before the multiply (required on v5e: no bf16 VPU).
    acc = gath_ref[0].astype(jnp.float32) * w_ref[:, 0:1]
    for j in range(1, k1):      # k is small & static -> unrolled VPU FMA chain
        acc = acc + gath_ref[j].astype(jnp.float32) * w_ref[:, j:j + 1]
    out_ref[...] = acc.astype(out_ref.dtype)


# ---------------------------------------------------------------------------
# Kernel 2: decoder, tiled sigmoid(u @ v.T) on the MXU.
# v is pre-transposed to (D, sv) in the wrapper, so this is a plain NN
# contraction (no XLU transpose of the rhs tile per grid step) with a
# lane-dense bf16 output tile.
# ---------------------------------------------------------------------------
def _decode_kernel(u_ref, vt_ref, out_ref):
    x = jax.lax.dot_general(u_ref[...], vt_ref[...],
                            dimension_numbers=(((1,), (0,)), ((), ())),
                            preferred_element_type=jnp.float32)
    out_ref[...] = jax.nn.sigmoid(x).astype(out_ref.dtype)


# ---------------------------------------------------------------------------
# Wrappers
# ---------------------------------------------------------------------------
def merge_neighbor_and_mask(sim, feature, mask_bool, k, *, tm_target=512):
    """merge_neighbor_feature + where(mask, feature, merged), Pallas-backed."""
    N, D = feature.shape
    if k < 0 or k > N:
        # TODO(synk): the dense k==N case should be a row-normalized sim @
        # feature MXU matmul kernel; clamping keeps semantics but scales N*N*D.
        k = N

    # Cast BEFORE the gather so the (k+1, N, D) array materializes in bf16.
    feat_bf16 = feature.astype(jnp.bfloat16)
    mask_f = mask_bool.reshape(N, 1).astype(jnp.float32)

    # Data-dependent glue stays in XLA: top-k select + row gather.
    vals, idx = jax.lax.top_k(sim, k)                          # (N, k)
    denom = vals.sum(axis=1, keepdims=True)
    # Guard isolated (all-zero similarity) rows against 0/0 (PyTorch -> NaN).
    w = vals / jnp.where(denom == 0.0, 1.0, denom)             # rows sum to 1
    # Fold where(mask, feature, merged) into the weights: slice 0 = self row
    # with weight mask, neighbor weights scaled by (1 - mask).
    w_all = jnp.concatenate([mask_f, w * (1.0 - mask_f)], axis=1)  # (N, k+1)
    w_all = w_all.astype(jnp.float32)
    idx_all = jnp.concatenate(
        [jnp.arange(N, dtype=idx.dtype)[:, None], idx], axis=1)   # (N, k+1)
    gathered = feat_bf16[idx_all.T]                            # (k+1, N, D) bf16
    # TODO(synk): for D >= ~128, move this gather in-kernel (scalar-prefetched
    # idx + manual make_async_copy) to avoid materializing (k+1, N, D) in HBM;
    # at small D the per-row DMAs are descriptor-bound, so XLA's gather stays.

    k1 = k + 1
    # Double-buffered VMEM bytes per row of a tile (bf16 gathered + f32 w + bf16 out).
    row_bytes = k1 * D * 2 * 2 + k1 * 4 * 2 + D * 2 * 2
    tm = _pick_tile(N, tm_target, 16, vmem_row_bytes=row_bytes,
                    vmem_budget=20 * 1024 * 1024)
    Np = _round_up(N, tm)
    pad = Np - N
    if pad:
        gathered = jnp.pad(gathered, ((0, 0), (0, pad), (0, 0)))
        w_all = jnp.pad(w_all, ((0, pad), (0, 0)))

    # TODO(synk): D=32 leaves each vreg 1/4 occupied and the (tm, D<128) output
    # triggers masked partial stores; production should use D % 128 == 0 or a
    # packed (N*D/128, 128) row layout for the smoothing path.
    out = pl.pallas_call(
        _smooth_kernel,
        out_shape=jax.ShapeDtypeStruct((Np, D), jnp.bfloat16),
        grid=(Np // tm,),
        in_specs=[
            pl.BlockSpec((k1, tm, D), lambda i: (0, i, 0)),
            pl.BlockSpec((tm, k1), lambda i: (i, 0)),
        ],
        out_specs=pl.BlockSpec((tm, D), lambda i: (i, 0)),
        compiler_params=pltpu.CompilerParams(
            dimension_semantics=("parallel",),
            vmem_limit_bytes=48 * 1024 * 1024),
    )(gathered, w_all)
    return out[:N]


def decode(u, v, *, tm_target=256, tn_target=512):
    """sigmoid(u @ v.T): bf16 operands, f32 MXU accumulate, bf16 output."""
    su, D = u.shape
    sv, _ = v.shape
    ub = u.astype(jnp.bfloat16)
    vt = v.astype(jnp.bfloat16).T                # (D, sv): NN contraction, lane-dense rhs

    tm = _pick_tile(su, tm_target, 16)
    tn = _pick_tile(sv, tn_target, 128)          # lane-dense output tiles
    sup = _round_up(su, tm)
    svp = _round_up(sv, tn)
    if sup != su:
        ub = jnp.pad(ub, ((0, sup - su), (0, 0)))
    if svp != sv:
        vt = jnp.pad(vt, ((0, 0), (0, svp - sv)))

    out = pl.pallas_call(
        _decode_kernel,
        out_shape=jax.ShapeDtypeStruct((sup, svp), jnp.bfloat16),
        grid=(sup // tm, svp // tn),
        in_specs=[
            pl.BlockSpec((tm, D), lambda i, j: (i, 0)),
            pl.BlockSpec((D, tn), lambda i, j: (0, j)),
        ],
        out_specs=pl.BlockSpec((tm, tn), lambda i, j: (i, j)),
        compiler_params=pltpu.CompilerParams(
            dimension_semantics=("parallel", "parallel")),
    )(ub, vt)
    return out[:su, :sv]


def smooth_decoder_forward(u, v, sim, mask, k=20, training=False):
    """Forward pass of SmoothDecoder.

    `sim` and `mask` stand in for the module's cached buffers (built once from
    the sparse batch edges / interaction pairs in the original code).
    training=True  -> plain sigmoid(u @ v.T)             (no smoothing)
    training=False -> smooth features first, then decode (eval path)
    """
    size_u = u.shape[0]
    if not training:
        feature = jnp.concatenate([u, v], axis=0)
        feature = merge_neighbor_and_mask(sim, feature, mask, k)   # bf16 (N, D)
        u = feature[:size_u]
        v = feature[size_u:]
    outputs = decode(u, v)
    return outputs, u, v


# ---------------------------------------------------------------------------
# Pure-JAX f32 reference (mirrors the PyTorch math) for a correctness check.
# ---------------------------------------------------------------------------
def _reference_forward(u, v, sim, mask, k):
    feature = jnp.concatenate([u, v], axis=0)
    N = feature.shape[0]
    vals, idx = jax.lax.top_k(sim, k)
    gathered = feature[idx.reshape(-1)].reshape(N, k, -1) * vals[:, :, None]
    merged = gathered.sum(axis=1) / vals.sum(axis=1, keepdims=True)
    feature = jnp.where(mask.reshape(N, 1), feature, merged)
    su = u.shape[0]
    u2, v2 = feature[:su], feature[su:]
    return jax.nn.sigmoid(u2 @ v2.T), u2, v2


if __name__ == "__main__":
    size_u, size_v, D, k = 8, 8, 32, 4
    N = size_u + size_v

    key = jax.random.PRNGKey(0)
    ku, kv, ksu, ksv = jax.random.split(key, 4)
    u = jax.random.normal(ku, (size_u, D), dtype=jnp.float32)
    v = jax.random.normal(kv, (size_v, D), dtype=jnp.float32)

    # "sim" buffer: dense block-diagonal similarity (u_edge ++ v_edge densified).
    sim_u = jax.random.uniform(ksu, (size_u, size_u), dtype=jnp.float32)
    sim_v = jax.random.uniform(ksv, (size_v, size_v), dtype=jnp.float32)
    sim_u = 0.5 * (sim_u + sim_u.T)
    sim_v = 0.5 * (sim_v + sim_v.T)
    sim = jnp.zeros((N, N), jnp.float32)
    sim = sim.at[:size_u, :size_u].set(sim_u)
    sim = sim.at[size_u:, size_u:].set(sim_v)

    # "mask" buffer: nodes that appear in at least one known interaction.
    # TODO(synk): the PyTorch code builds this mask from batch.interaction_pair
    # during training; a deterministic stand-in is constructed here.
    mask = jnp.zeros((N, 1), dtype=bool)
    mask = mask.at[jnp.arange(0, size_u, 2)].set(True)
    mask = mask.at[size_u + jnp.arange(1, size_v, 2)].set(True)

    outputs, u_out, v_out = smooth_decoder_forward(u, v, sim, mask, k=k,
                                                   training=False)
    jax.block_until_ready(outputs)

    ref_out, ref_u, ref_v = _reference_forward(u, v, sim, mask, k)
    # bf16 operands/outputs with f32 accumulation -> compare against the f32
    # reference at a bf16-appropriate tolerance.
    np.testing.assert_allclose(np.asarray(outputs).astype(np.float32),
                               np.asarray(ref_out), rtol=2e-2, atol=2e-2)
    np.testing.assert_allclose(np.asarray(u_out).astype(np.float32),
                               np.asarray(ref_u), rtol=2e-2, atol=2e-2)
    np.testing.assert_allclose(np.asarray(v_out).astype(np.float32),
                               np.asarray(ref_v), rtol=2e-2, atol=2e-2)

    print("KERNEL_OK")
</pallas_src>

<mosaic_0001>
module attributes {stable_mosaic.version = 11 : i64} {
  func.func @_smooth_kernel(%arg0: i32, %arg1: memref<5x16x32xbf16, #tpu.memory_space<vmem>>, %arg2: memref<16x5xf32, #tpu.memory_space<vmem>>, %arg3: memref<16x32xbf16, #tpu.memory_space<vmem>>) attributes {dimension_semantics = [#tpu.dimension_semantics<parallel>], iteration_bounds = array<i64: 1>, scalar_prefetch = 0 : i64, scratch_operands = 0 : i64, tpu.core_type = #tpu.core_type<tc>, window_params = [{transform_indices = @transform_0, window_bounds = array<i64: 5, 16, 32>}, {transform_indices = @transform_1, window_bounds = array<i64: 16, 5>}, {transform_indices = @transform_2, window_bounds = array<i64: 16, 32>}]} {
    %c0 = arith.constant 0 : index
    %c0_0 = arith.constant 0 : index
    %c0_1 = arith.constant 0 : index
    %0 = vector.load %arg1[%c0, %c0_0, %c0_1] : memref<5x16x32xbf16, #tpu.memory_space<vmem>>, vector<1x16x32xbf16>
    %1 = vector.shape_cast %0 : vector<1x16x32xbf16> to vector<16x32xbf16>
    %2 = arith.extf %1 : vector<16x32xbf16> to vector<16x32xf32>
    %c0_2 = arith.constant 0 : index
    %c0_3 = arith.constant 0 : index
    %3 = vector.load %arg2[%c0_2, %c0_3] : memref<16x5xf32, #tpu.memory_space<vmem>>, vector<16x1xf32>
    %4 = vector.broadcast %3 : vector<16x1xf32> to vector<16x32xf32>
    %5 = arith.mulf %2, %4 : vector<16x32xf32>
    %c1 = arith.constant 1 : index
    %c0_4 = arith.constant 0 : index
    %c0_5 = arith.constant 0 : index
    %6 = vector.load %arg1[%c1, %c0_4, %c0_5] : memref<5x16x32xbf16, #tpu.memory_space<vmem>>, vector<1x16x32xbf16>
    %7 = vector.shape_cast %6 : vector<1x16x32xbf16> to vector<16x32xbf16>
    %8 = arith.extf %7 : vector<16x32xbf16> to vector<16x32xf32>
    %c0_6 = arith.constant 0 : index
    %c1_7 = arith.constant 1 : index
    %9 = vector.load %arg2[%c0_6, %c1_7] : memref<16x5xf32, #tpu.memory_space<vmem>>, vector<16x1xf32>
    %10 = vector.broadcast %9 : vector<16x1xf32> to vector<16x32xf32>
    %11 = arith.mulf %8, %10 : vector<16x32xf32>
    %12 = arith.addf %5, %11 : vector<16x32xf32>
    %c2 = arith.constant 2 : index
    %c0_8 = arith.constant 0 : index
    %c0_9 = arith.constant 0 : index
    %13 = vector.load %arg1[%c2, %c0_8, %c0_9] : memref<5x16x32xbf16, #tpu.memory_space<vmem>>, vector<1x16x32xbf16>
    %14 = vector.shape_cast %13 : vector<1x16x32xbf16> to vector<16x32xbf16>
    %15 = arith.extf %14 : vector<16x32xbf16> to vector<16x32xf32>
    %c0_10 = arith.constant 0 : index
    %c2_11 = arith.constant 2 : index
    %16 = vector.load %arg2[%c0_10, %c2_11] : memref<16x5xf32, #tpu.memory_space<vmem>>, vector<16x1xf32>
    %17 = vector.broadcast %16 : vector<16x1xf32> to vector<16x32xf32>
    %18 = arith.mulf %15, %17 : vector<16x32xf32>
    %19 = arith.addf %12, %18 : vector<16x32xf32>
    %c3 = arith.constant 3 : index
    %c0_12 = arith.constant 0 : index
    %c0_13 = arith.constant 0 : index
    %20 = vector.load %arg1[%c3, %c0_12, %c0_13] : memref<5x16x32xbf16, #tpu.memory_space<vmem>>, vector<1x16x32xbf16>
    %21 = vector.shape_cast %20 : vector<1x16x32xbf16> to vector<16x32xbf16>
    %22 = arith.extf %21 : vector<16x32xbf16> to vector<16x32xf32>
    %c0_14 = arith.constant 0 : index
    %c3_15 = arith.constant 3 : index
    %23 = vector.load %arg2[%c0_14, %c3_15] : memref<16x5xf32, #tpu.memory_space<vmem>>, vector<16x1xf32>
    %24 = vector.broadcast %23 : vector<16x1xf32> to vector<16x32xf32>
    %25 = arith.mulf %22, %24 : vector<16x32xf32>
    %26 = arith.addf %19, %25 : vector<16x32xf32>
    %c4 = arith.constant 4 : index
    %c0_16 = arith.constant 0 : index
    %c0_17 = arith.constant 0 : index
    %27 = vector.load %arg1[%c4, %c0_16, %c0_17] : memref<5x16x32xbf16, #tpu.memory_space<vmem>>, vector<1x16x32xbf16>
    %28 = vector.shape_cast %27 : vector<1x16x32xbf16> to vector<16x32xbf16>
    %29 = arith.extf %28 : vector<16x32xbf16> to vector<16x32xf32>
    %c0_18 = arith.constant 0 : index
    %c4_19 = arith.constant 4 : index
    %30 = vector.load %arg2[%c0_18, %c4_19] : memref<16x5xf32, #tpu.memory_space<vmem>>, vector<16x1xf32>
    %31 = vector.broadcast %30 : vector<16x1xf32> to vector<16x32xf32>
    %32 = arith.mulf %29, %31 : vector<16x32xf32>
    %33 = arith.addf %26, %32 : vector<16x32xf32>
    %34 = arith.truncf %33 : vector<16x32xf32> to vector<16x32xbf16>
    %c0_20 = arith.constant 0 : index
    %c0_21 = arith.constant 0 : index
    %35 = vector.load %arg3[%c0_20, %c0_21] : memref<16x32xbf16, #tpu.memory_space<vmem>>, vector<16x32xbf16>
    tpu.vector_store %arg3[%c0_20, %c0_21], %34 {strides = array<i32>} : memref<16x32xbf16, #tpu.memory_space<vmem>>, vector<16x32xbf16>,
    return
  }
  func.func @transform_0(%arg0: i32) -> (i32, i32, i32) {
    %c0_i32 = arith.constant 0 : i32
    %c0_i32_0 = arith.constant 0 : i32
    %c0_i32_1 = arith.constant 0 : i32
    return %c0_i32, %arg0, %c0_i32_0 : i32, i32, i32
  }
  func.func @transform_1(%arg0: i32) -> (i32, i32) {
    %c0_i32 = arith.constant 0 : i32
    %c0_i32_0 = arith.constant 0 : i32
    return %arg0, %c0_i32 : i32, i32
  }
  func.func @transform_2(%arg0: i32) -> (i32, i32) {
    %c0_i32 = arith.constant 0 : i32
    %c0_i32_0 = arith.constant 0 : i32
    return %arg0, %c0_i32 : i32, i32
  }
}

</mosaic_0001>

<llo_original>
// kernel: tpu_custom_call.1
$region0: #{tpu_custom_call.1}
  #allocation0 [shape = 'u32[]', space=smem, size = 0x4, offset = 0x4, fixed_abs, tag = 'smem constant byte address 0x4 - core index']
  #allocation1 [shape = 'u32[72,128]{1,0:T(1,128)}', space=vmem, size = 0x9000, scoped, tag = 'internal scratch']
  %s0 = inlined_call_operand.hbm [shape: bf16[5,16,32], index: 0, kind: input, shape index: {}]
  %s1 = inlined_call_operand.vmem [shape: f32[16,5], index: 1, kind: input, shape index: {}]
  %s2 = inlined_call_operand.hbm [shape: bf16[16,32], index: 2, kind: output, shape index: {}]
  %s3 = sld [smem:[#allocation0]]
  $region22: #{tpu_custom_call.1} parent=0
    _
  %s5 = ssub.s32 1, %s3
  %s6 = scalar_select 0, %s5, %s3
  $region1: #{tpu_custom_call.1} parent=0
    #allocation2 [shape = 'u8[20480]{0}', space=vmem, size = 0x5000, scoped, tag = 'input window, operand 0, single buffered']
    #allocation3 [shape = 's32[1]{0}', space=sflag, size = 0x4, scoped, tag = 'scoped memory for tpu_custom_call.1']
    #allocation4 [shape = 's32[1]{0}', space=sflag, size = 0x4, scoped, tag = 'scoped memory for tpu_custom_call.1']
    #allocation5 [shape = 'u8[4096]{0}', space=vmem, size = 0x1000, scoped, tag = 'output window, operand 0, single buffered']
    %7 = vsyncpa [#allocation3], 0
    %8 = vsyncpa [#allocation4], 0
    // Predicated region
    $region2: #{tpu_custom_call.1} parent=1 // pred_check
      _
    $region3: #{tpu_custom_call.1} parent=1 // pred_check_branch
      %10 = sbr.rel (0) target = $region5
    $region4: #{tpu_custom_call.1} parent=1 // pred_region
      %12 = vsyncadd [#allocation3], 0
      %s13 = sshll.u32 %s0, 4
      %s14 = int_to_ptr.hbm [resolvable:$true] %s13
      %s15 = sshll.u32 [#allocation2], 4
      %s16 = int_to_ptr.vmem [resolvable:$true] %s15
      %21 = dma.hbm_to_vmem [thread:$0]  %s14, 640, %s16, [#allocation3], 64, 64, 4
    $region5: #{tpu_custom_call.1} parent=1 // pred_fallthru
      _
    // Predicated region
    $region6: #{tpu_custom_call.1} parent=1 // pred_check
      _
    $region7: #{tpu_custom_call.1} parent=1 // pred_check_branch
      %23 = sbr.rel (0) target = $region9
    $region8: #{tpu_custom_call.1} parent=1 // pred_region
      _
    $region9: #{tpu_custom_call.1} parent=1 // pred_fallthru
      _
    // Predicated region
    $region10: #{tpu_custom_call.1} parent=1 // pred_check
      _
    $region11: #{tpu_custom_call.1} parent=1 // pred_check_branch
      %25 = sbr.rel (0) target = $region13
    $region12: #{tpu_custom_call.1} parent=1 // pred_region
      %27 = dma.done [#allocation3], 640
    $region13: #{tpu_custom_call.1} parent=1 // pred_fallthru
      _
    %v28 = vld [vmem:[#allocation2] sm:$0xf]
    %v29 = vld [vmem:[#allocation2 + $0x4] sm:$0xf]
    %v30 = vunpack.c.l.bf16 %v28
    %v31 = vunpack.c.l.bf16 %v29
    %v32 = vld [vmem:[%s1] sm:$0xff]
    %v33 = vld [vmem:[%s1 + $0x8] sm:$0xff]
    %35 = vset.pattern.permute.xlu0 0
    %36 = vperm.xlu0 %35, %v32
    %v37 = vpop.permute.xlu0 %36
    %40 = vset.pattern.permute.xlu0 0
    %41 = vperm.xlu0 %40, %v33
    %v42 = vpop.permute.xlu0 %41
    %v44 = vmul.f32 %v30, %v37
    %v45 = vmul.f32 %v31, %v42
    %s46 = scalar_lea.vmem [#allocation2], 8
    %v47 = vld [vmem:[%s46] sm:$0xf]
    %v48 = vld [vmem:[%s46 + $0x4] sm:$0xf]
    %v49 = vunpack.c.l.bf16 %v47
    %v50 = vunpack.c.l.bf16 %v48
    %51 = vset.pattern.permute.xlu0 1
    %52 = vperm.xlu0 %51, %v32
    %v53 = vpop.permute.xlu0 %52
    %55 = vset.pattern.permute.xlu0 1
    %56 = vperm.xlu0 %55, %v33
    %v57 = vpop.permute.xlu0 %56
    %v59 = vmul.f32 %v49, %v53
    %v60 = vmul.f32 %v50, %v57
    %v61 = vadd.f32 %v44, %v59
    %v62 = vadd.f32 %v45, %v60
    %s63 = scalar_lea.vmem [#allocation2], 16
    %v64 = vld [vmem:[%s63] sm:$0xf]
    %v65 = vld [vmem:[%s63 + $0x4] sm:$0xf]
    %v66 = vunpack.c.l.bf16 %v64
    %v67 = vunpack.c.l.bf16 %v65
    %68 = vset.pattern.permute.xlu0 2
    %69 = vperm.xlu0 %68, %v32
    %v70 = vpop.permute.xlu0 %69
    %72 = vset.pattern.permute.xlu0 2
    %73 = vperm.xlu0 %72, %v33
    %v74 = vpop.permute.xlu0 %73
    %v76 = vmul.f32 %v66, %v70
    %v77 = vmul.f32 %v67, %v74
    %v78 = vadd.f32 %v61, %v76
    %v79 = vadd.f32 %v62, %v77
    %s80 = scalar_lea.vmem [#allocation2], 24
    %v81 = vld [vmem:[%s80] sm:$0xf]
    %v82 = vld [vmem:[%s80 + $0x4] sm:$0xf]
    %v83 = vunpack.c.l.bf16 %v81
    %v84 = vunpack.c.l.bf16 %v82
    %85 = vset.pattern.permute.xlu0 3
    %86 = vperm.xlu0 %85, %v32
    %v87 = vpop.permute.xlu0 %86
    %89 = vset.pattern.permute.xlu0 3
    %90 = vperm.xlu0 %89, %v33
    %v91 = vpop.permute.xlu0 %90
    %v93 = vmul.f32 %v83, %v87
    %v94 = vmul.f32 %v84, %v91
    %v95 = vadd.f32 %v78, %v93
    %v96 = vadd.f32 %v79, %v94
    %s97 = scalar_lea.vmem [#allocation2], 32
    %v98 = vld [vmem:[%s97] sm:$0xf]
    %v99 = vld [vmem:[%s97 + $0x4] sm:$0xf]
    %v100 = vunpack.c.l.bf16 %v98
    %v101 = vunpack.c.l.bf16 %v99
    %102 = vset.pattern.permute.xlu0 4
    %103 = vperm.xlu0 %102, %v32
    %v104 = vpop.permute.xlu0 %103
    %106 = vset.pattern.permute.xlu0 4
    %107 = vperm.xlu0 %106, %v33
    %v108 = vpop.permute.xlu0 %107
    %v110 = vmul.f32 %v100, %v104
    %v111 = vmul.f32 %v101, %v108
    %v112 = vadd.f32 %v95, %v110
    %v113 = vadd.f32 %v96, %v111
    %v114 = vpack.c.bf16 %v112, %v112
    %v115 = vpack.c.bf16 %v113, %v113
    %vm116 = vcmask 257024
    %117 = vst.msk [vmem:[#allocation5] sm:$0xf] %vm116, %v114
    %118 = vst.msk [vmem:[#allocation5 + $0x4] sm:$0xf] %vm116, %v115
    // Predicated region
    $region14: #{tpu_custom_call.1} parent=1 // pred_check
      _
    $region15: #{tpu_custom_call.1} parent=1 // pred_check_branch
      %120 = sbr.rel (0) target = $region17
    $region16: #{tpu_custom_call.1} parent=1 // pred_region
      %122 = vsyncadd [#allocation4], 0
      %s123 = sshll.u32 [#allocation5], 4
      %s124 = int_to_ptr.vmem [resolvable:$true] %s123
      %s125 = sshll.u32 %s2, 4
      %s126 = int_to_ptr.hbm [resolvable:$true] %s125
      %131 = dma.vmem_to_hbm [thread:$0]  %s124, 128, %s126, [#allocation4], 64, 64, 4
    $region17: #{tpu_custom_call.1} parent=1 // pred_fallthru
      _
    // Predicated region
    $region18: #{tpu_custom_call.1} parent=1 // pred_check
      _
    $region19: #{tpu_custom_call.1} parent=1 // pred_check_branch
      %133 = sbr.rel (0) target = $region21
    $region20: #{tpu_custom_call.1} parent=1 // pred_region
      %135 = dma.done [#allocation4], 128
    $region21: #{tpu_custom_call.1} parent=1 // pred_fallthru
      _
    %136 = vsyncpa [#allocation3], 1
    %137 = vsyncpa [#allocation4], 1

</llo_original>
